<compile_context>
chip_gen: v7x
topology: tpu7x:2x2x1
jax: 0.10.0
libtpu: 0.0.40
codegen_flags: <defaults>
</compile_context>

<pallas_src>
from functools import partial

import jax
import jax.numpy as jnp
from jax.experimental import pallas as pl
from jax.experimental.pallas import tpu as pltpu


def _round_up(n: int, m: int) -> int:
    return ((n + m - 1) // m) * m


# --------------------------------------------------------------------------
# Kernel
# --------------------------------------------------------------------------
def _fused_mlp_kernel(*refs, num_layers: int, dims_pad, compute_dtype):
    """Fused MLP: x -> [Linear (+ReLU on hidden)] * num_layers -> o.

    refs = (x_ref, b_ref, w_ref_0, ..., w_ref_{L-1}, o_ref)
      x_ref : (Bt, dims_pad[0])            activation tile (lane-dense)
      b_ref : (L, max_out_pad)  f32        all biases, zero-padded
      w_ref_l : (dims_pad[l], dims_pad[l+1])  layer-l weight, zero-padded,
                already transposed to (in, out) and stored in compute_dtype
      o_ref : (Bt, dims_pad[-1])           output tile
    """
    x_ref = refs[0]
    b_ref = refs[1]
    w_refs = refs[2:2 + num_layers]
    o_ref = refs[2 + num_layers]

    x = x_ref[...].astype(jnp.float32)
    # Static Python loop — layer count is small and known at trace time.
    for l in range(num_layers):
        dout_p = dims_pad[l + 1]
        y = jnp.dot(
            x.astype(compute_dtype),        # only the activation is cast
            w_refs[l][...],                 # already stored in compute_dtype
            preferred_element_type=jnp.float32,
        )
        y = y + b_ref[l:l + 1, :dout_p]     # (Bt, Dp) + (1, Dp) broadcast
        if l < num_layers - 1:
            y = jnp.maximum(y, 0.0)         # ReLU on hidden layers only
        x = y
    o_ref[...] = x.astype(o_ref.dtype)


# --------------------------------------------------------------------------
# One-time parameter preparation (padding / casting / stacking)
# --------------------------------------------------------------------------
def prepare_params(params, *, compute_dtype=jnp.float32):
    """Pad, transpose-stack and cast the layer parameters ONCE at setup.

    params: list of (w, b) with w of shape (Din, Dout) (already transposed
            relative to torch's (out, in)) and b of shape (Dout,) or (1, Dout).
    """
    num_layers = len(params)
    dims = [params[0][0].shape[0]] + [w.shape[1] for (w, _) in params]
    dims_pad = tuple(max(128, _round_up(d, 128)) for d in dims)
    max_out_pad = max(dims_pad[1:])

    w_list = []
    for l, (w, _) in enumerate(params):
        din, dout = w.shape
        wp = jnp.zeros((dims_pad[l], dims_pad[l + 1]), compute_dtype)
        wp = wp.at[:din, :dout].set(w.astype(compute_dtype))
        w_list.append(wp)

    b_stack = jnp.zeros((num_layers, max_out_pad), jnp.float32)
    for l, (_, b) in enumerate(params):
        bvec = jnp.reshape(b, (-1,)).astype(jnp.float32)
        b_stack = b_stack.at[l, :bvec.shape[0]].set(bvec)

    return {
        "w_list": tuple(w_list),
        "b_stack": b_stack,
        "dims": tuple(dims),
        "dims_pad": dims_pad,
        "max_out_pad": max_out_pad,
        "compute_dtype": compute_dtype,
    }


# --------------------------------------------------------------------------
# Forward wrapper
# --------------------------------------------------------------------------
def base_model_forward(x, prepared, *, batch_tile=256):
    """Sequential Linear stack (ReLU on hidden layers) as one Pallas kernel."""
    dims = prepared["dims"]
    dims_pad = prepared["dims_pad"]
    max_out_pad = prepared["max_out_pad"]
    w_list = prepared["w_list"]
    b_stack = prepared["b_stack"]
    compute_dtype = prepared["compute_dtype"]
    num_layers = len(w_list)

    B = x.shape[0]
    d0, d0p, dlp = dims[0], dims_pad[0], dims_pad[-1]

    # Batch tiling: multiple of 8 sublanes, default 256-wide tiles.
    b_tile = _round_up(min(batch_tile, _round_up(B, 8)), 8)
    b_pad = _round_up(B, b_tile)
    grid_b = b_pad // b_tile

    # Pad the activation only when needed (zero pad keeps the math exact).
    if (B, x.shape[1]) != (b_pad, d0p):
        x_p = jnp.pad(x.astype(jnp.float32),
                      ((0, b_pad - B), (0, d0p - d0)))
    else:
        x_p = x.astype(jnp.float32)

    # ---- VMEM budget (generation-aware) -----------------------------------
    wbytes = jnp.dtype(compute_dtype).itemsize
    bytes_w = sum(dims_pad[l] * dims_pad[l + 1] for l in range(num_layers)) * wbytes
    bytes_b = num_layers * max_out_pad * 4
    bytes_io = 2 * b_tile * (d0p + dlp) * 4            # double-buffered x / o
    bytes_inter = b_tile * sum(dims_pad) * 4           # carried activations
    est = bytes_io + 2 * (bytes_w + bytes_b) + bytes_inter
    try:
        cap_phys = int(pltpu.get_tpu_info().vmem_capacity_bytes)
    except Exception:
        cap_phys = 64 * 1024 * 1024
    cap = (cap_phys * 7) // 8                          # headroom for compiler scratch
    vmem_limit = int(min(cap, max(32 * 1024 * 1024, 2 * est)))

    kernel = partial(_fused_mlp_kernel, num_layers=num_layers,
                     dims_pad=dims_pad, compute_dtype=compute_dtype)

    def build_call(single_buffer_weights: bool):
        if single_buffer_weights:
            wkw = {"pipeline_mode": pl.Buffered(1)}    # weights DMA'd once, resident
        else:
            wkw = {}
        in_specs = [
            pl.BlockSpec((b_tile, d0p), lambda i: (i, 0)),
            pl.BlockSpec((num_layers, max_out_pad), lambda i: (0, 0), **wkw),
        ]
        for l in range(num_layers):
            in_specs.append(
                pl.BlockSpec((dims_pad[l], dims_pad[l + 1]),
                             lambda i: (0, 0), **wkw))
        return pl.pallas_call(
            kernel,
            out_shape=jax.ShapeDtypeStruct((b_pad, dlp), jnp.float32),
            grid=(grid_b,),
            in_specs=in_specs,
            out_specs=pl.BlockSpec((b_tile, dlp), lambda i: (i, 0)),
            compiler_params=pltpu.CompilerParams(
                dimension_semantics=("parallel",),     # v7x: split batch across TCs
                vmem_limit_bytes=vmem_limit,
            ),
        )

    try:
        out_padded = build_call(True)(x_p, b_stack, *w_list)
    except Exception:
        # Fallback: default double-buffering if Buffered(1) is not accepted.
        out_padded = build_call(False)(x_p, b_stack, *w_list)

    # Slice back to the logical (B, Dout) extent.
    return out_padded[:B, :dims[-1]]


# --------------------------------------------------------------------------
# Init / reference / demo
# --------------------------------------------------------------------------
def init_params(key, dims):
    """Deterministic torch-nn.Linear-style init; weights returned as (in, out)."""
    params = []
    for l in range(len(dims) - 1):
        din, dout = dims[l], dims[l + 1]
        key, kw, kb = jax.random.split(key, 3)
        bound = 1.0 / jnp.sqrt(jnp.float32(din))       # torch default uniform bound
        w = jax.random.uniform(kw, (din, dout), jnp.float32, -bound, bound)
        b = jax.random.uniform(kb, (dout,), jnp.float32, -bound, bound)
        params.append((w, b))
    return params


def _reference_forward(x, params):
    """Pure-JAX reference for correctness checking."""
    n = len(params)
    for i, (w, b) in enumerate(params):
        x = jnp.dot(x, w, preferred_element_type=jnp.float32) + b.reshape(1, -1)
        if i < n - 1:
            x = jnp.maximum(x, 0.0)
    return x


if __name__ == "__main__":
    key = jax.random.PRNGKey(0)
    key, kx = jax.random.split(key)

    # Small shapes: batch=8, layer widths 32 -> 64 -> 64 -> 16
    dims = [32, 64, 64, 16]
    batch = 8

    x = jax.random.normal(kx, (batch, dims[0]), jnp.float32)
    params = init_params(key, dims)

    # Padded / stacked operands are built once (not per forward call).
    # For v6e/v7x throughput use compute_dtype=jnp.bfloat16; f32 here keeps
    # the PyTorch numerics exactly.
    prepared = prepare_params(params, compute_dtype=jnp.float32)

    out = base_model_forward(x, prepared)
    jax.block_until_ready(out)

    ref = _reference_forward(x, params)
    jax.block_until_ready(ref)

    assert out.shape == (batch, dims[-1])
    assert out.dtype == jnp.float32
    assert bool(jnp.all(jnp.isfinite(out)))
    # f32 compute path: only MXU-pass rounding differences vs the XLA dot.
    assert bool(jnp.allclose(out, ref, atol=2e-3, rtol=2e-3))
    print("KERNEL_OK")
</pallas_src>

<mosaic_0001>
module attributes {stable_mosaic.version = 11 : i64} {
  func.func @_fused_mlp_kernel(%arg0: i32, %arg1: memref<8x128xf32, #tpu.memory_space<vmem>>, %arg2: memref<3x128xf32, #tpu.memory_space<vmem>>, %arg3: memref<128x128xf32, #tpu.memory_space<vmem>>, %arg4: memref<128x128xf32, #tpu.memory_space<vmem>>, %arg5: memref<128x128xf32, #tpu.memory_space<vmem>>, %arg6: memref<8x128xf32, #tpu.memory_space<vmem>>) attributes {dimension_semantics = [#tpu.dimension_semantics<parallel>], iteration_bounds = array<i64: 1>, scalar_prefetch = 0 : i64, scratch_operands = 0 : i64, tpu.core_type = #tpu.core_type<tc>, window_params = [{transform_indices = @transform_0, window_bounds = array<i64: 8, 128>}, {pipeline_mode = #tpu.pipeline_mode<synchronous>, transform_indices = @transform_1, window_bounds = array<i64: 3, 128>}, {pipeline_mode = #tpu.pipeline_mode<synchronous>, transform_indices = @transform_2, window_bounds = array<i64: 128, 128>}, {pipeline_mode = #tpu.pipeline_mode<synchronous>, transform_indices = @transform_3, window_bounds = array<i64: 128, 128>}, {pipeline_mode = #tpu.pipeline_mode<synchronous>, transform_indices = @transform_4, window_bounds = array<i64: 128, 128>}, {transform_indices = @transform_5, window_bounds = array<i64: 8, 128>}]} {
    %c0 = arith.constant 0 : index
    %c0_0 = arith.constant 0 : index
    %0 = vector.load %arg1[%c0, %c0_0] : memref<8x128xf32, #tpu.memory_space<vmem>>, vector<8x128xf32>
    %c0_1 = arith.constant 0 : index
    %c0_2 = arith.constant 0 : index
    %1 = vector.load %arg3[%c0_1, %c0_2] : memref<128x128xf32, #tpu.memory_space<vmem>>, vector<128x128xf32>
    %cst = arith.constant dense<0.000000e+00> : vector<8x128xf32>
    %2 = tpu.matmul %0, %1, %cst {dimension_numbers = #tpu.dot_dimension_numbers<[1], [0], [0], [1], [0, 0, 1, 1], [], []>} : vector<8x128xf32>, vector<128x128xf32>, vector<8x128xf32> -> vector<8x128xf32>
    %c0_3 = arith.constant 0 : index
    %c0_4 = arith.constant 0 : index
    %3 = vector.load %arg2[%c0_3, %c0_4] : memref<3x128xf32, #tpu.memory_space<vmem>>, vector<1x128xf32>
    %4 = vector.broadcast %3 : vector<1x128xf32> to vector<8x128xf32>
    %5 = arith.addf %2, %4 : vector<8x128xf32>
    %cst_5 = arith.constant 0.000000e+00 : f32
    %6 = vector.broadcast %cst_5 : f32 to vector<8x128xf32>
    %7 = arith.maximumf %5, %6 : vector<8x128xf32>
    %c0_6 = arith.constant 0 : index
    %c0_7 = arith.constant 0 : index
    %8 = vector.load %arg4[%c0_6, %c0_7] : memref<128x128xf32, #tpu.memory_space<vmem>>, vector<128x128xf32>
    %cst_8 = arith.constant dense<0.000000e+00> : vector<8x128xf32>
    %9 = tpu.matmul %7, %8, %cst_8 {dimension_numbers = #tpu.dot_dimension_numbers<[1], [0], [0], [1], [0, 0, 1, 1], [], []>} : vector<8x128xf32>, vector<128x128xf32>, vector<8x128xf32> -> vector<8x128xf32>
    %c1 = arith.constant 1 : index
    %c0_9 = arith.constant 0 : index
    %10 = vector.load %arg2[%c1, %c0_9] : memref<3x128xf32, #tpu.memory_space<vmem>>, vector<1x128xf32>
    %11 = vector.broadcast %10 : vector<1x128xf32> to vector<8x128xf32>
    %12 = arith.addf %9, %11 : vector<8x128xf32>
    %cst_10 = arith.constant 0.000000e+00 : f32
    %13 = vector.broadcast %cst_10 : f32 to vector<8x128xf32>
    %14 = arith.maximumf %12, %13 : vector<8x128xf32>
    %c0_11 = arith.constant 0 : index
    %c0_12 = arith.constant 0 : index
    %15 = vector.load %arg5[%c0_11, %c0_12] : memref<128x128xf32, #tpu.memory_space<vmem>>, vector<128x128xf32>
    %cst_13 = arith.constant dense<0.000000e+00> : vector<8x128xf32>
    %16 = tpu.matmul %14, %15, %cst_13 {dimension_numbers = #tpu.dot_dimension_numbers<[1], [0], [0], [1], [0, 0, 1, 1], [], []>} : vector<8x128xf32>, vector<128x128xf32>, vector<8x128xf32> -> vector<8x128xf32>
    %c2 = arith.constant 2 : index
    %c0_14 = arith.constant 0 : index
    %17 = vector.load %arg2[%c2, %c0_14] : memref<3x128xf32, #tpu.memory_space<vmem>>, vector<1x128xf32>
    %18 = vector.broadcast %17 : vector<1x128xf32> to vector<8x128xf32>
    %19 = arith.addf %16, %18 : vector<8x128xf32>
    %c0_15 = arith.constant 0 : index
    %c0_16 = arith.constant 0 : index
    %20 = vector.load %arg6[%c0_15, %c0_16] : memref<8x128xf32, #tpu.memory_space<vmem>>, vector<8x128xf32>
    tpu.vector_store %arg6[%c0_15, %c0_16], %19 {strides = array<i32>} : memref<8x128xf32, #tpu.memory_space<vmem>>, vector<8x128xf32>,
    return
  }
  func.func @transform_0(%arg0: i32) -> (i32, i32) {
    %c0_i32 = arith.constant 0 : i32
    %c0_i32_0 = arith.constant 0 : i32
    return %arg0, %c0_i32 : i32, i32
  }
  func.func @transform_1(%arg0: i32) -> (i32, i32) {
    %c0_i32 = arith.constant 0 : i32
    %c0_i32_0 = arith.constant 0 : i32
    %c0_i32_1 = arith.constant 0 : i32
    return %c0_i32, %c0_i32_0 : i32, i32
  }
  func.func @transform_2(%arg0: i32) -> (i32, i32) {
    %c0_i32 = arith.constant 0 : i32
    %c0_i32_0 = arith.constant 0 : i32
    %c0_i32_1 = arith.constant 0 : i32
    return %c0_i32, %c0_i32_0 : i32, i32
  }
  func.func @transform_3(%arg0: i32) -> (i32, i32) {
    %c0_i32 = arith.constant 0 : i32
    %c0_i32_0 = arith.constant 0 : i32
    %c0_i32_1 = arith.constant 0 : i32
    return %c0_i32, %c0_i32_0 : i32, i32
  }
  func.func @transform_4(%arg0: i32) -> (i32, i32) {
    %c0_i32 = arith.constant 0 : i32
    %c0_i32_0 = arith.constant 0 : i32
    %c0_i32_1 = arith.constant 0 : i32
    return %c0_i32, %c0_i32_0 : i32, i32
  }
  func.func @transform_5(%arg0: i32) -> (i32, i32) {
    %c0_i32 = arith.constant 0 : i32
    %c0_i32_0 = arith.constant 0 : i32
    return %arg0, %c0_i32 : i32, i32
  }
}

module attributes {stable_mosaic.version = 11 : i64} {
  func.func @_fused_mlp_kernel(%arg0: i32, %arg1: memref<8x128xf32, #tpu.memory_space<vmem>>, %arg2: memref<3x128xf32, #tpu.memory_space<vmem>>, %arg3: memref<128x128xf32, #tpu.memory_space<vmem>>, %arg4: memref<128x128xf32, #tpu.memory_space<vmem>>, %arg5: memref<128x128xf32, #tpu.memory_space<vmem>>, %arg6: memref<8x128xf32, #tpu.memory_space<vmem>>) attributes {dimension_semantics = [#tpu.dimension_semantics<parallel>], iteration_bounds = array<i64: 1>, scalar_prefetch = 0 : i64, scratch_operands = 0 : i64, tpu.core_type = #tpu.core_type<tc>, window_params = [{transform_indices = @transform_0, window_bounds = array<i64: 8, 128>}, {pipeline_mode = #tpu.pipeline_mode<synchronous>, transform_indices = @transform_1, window_bounds = array<i64: 3, 128>}, {pipeline_mode = #tpu.pipeline_mode<synchronous>, transform_indices = @transform_2, window_bounds = array<i64: 128, 128>}, {pipeline_mode = #tpu.pipeline_mode<synchronous>, transform_indices = @transform_3, window_bounds = array<i64: 128, 128>}, {pipeline_mode = #tpu.pipeline_mode<synchronous>, transform_indices = @transform_4, window_bounds = array<i64: 128, 128>}, {transform_indices = @transform_5, window_bounds = array<i64: 8, 128>}]} {
    %c0 = arith.constant 0 : index
    %c0_0 = arith.constant 0 : index
    %0 = vector.load %arg1[%c0, %c0_0] : memref<8x128xf32, #tpu.memory_space<vmem>>, vector<8x128xf32>
    %c0_1 = arith.constant 0 : index
    %c0_2 = arith.constant 0 : index
    %1 = vector.load %arg3[%c0_1, %c0_2] : memref<128x128xf32, #tpu.memory_space<vmem>>, vector<128x128xf32>
    %cst = arith.constant dense<0.000000e+00> : vector<8x128xf32>
    %2 = tpu.matmul %0, %1, %cst {dimension_numbers = #tpu.dot_dimension_numbers<[1], [0], [0], [1], [0, 0, 1, 1], [], []>} : vector<8x128xf32>, vector<128x128xf32>, vector<8x128xf32> -> vector<8x128xf32>
    %c0_3 = arith.constant 0 : index
    %c0_4 = arith.constant 0 : index
    %3 = vector.load %arg2[%c0_3, %c0_4] : memref<3x128xf32, #tpu.memory_space<vmem>>, vector<1x128xf32>
    %4 = vector.broadcast %3 : vector<1x128xf32> to vector<8x128xf32>
    %5 = arith.addf %2, %4 : vector<8x128xf32>
    %cst_5 = arith.constant 0.000000e+00 : f32
    %6 = vector.broadcast %cst_5 : f32 to vector<8x128xf32>
    %7 = arith.maximumf %5, %6 : vector<8x128xf32>
    %c0_6 = arith.constant 0 : index
    %c0_7 = arith.constant 0 : index
    %8 = vector.load %arg4[%c0_6, %c0_7] : memref<128x128xf32, #tpu.memory_space<vmem>>, vector<128x128xf32>
    %cst_8 = arith.constant dense<0.000000e+00> : vector<8x128xf32>
    %9 = tpu.matmul %7, %8, %cst_8 {dimension_numbers = #tpu.dot_dimension_numbers<[1], [0], [0], [1], [0, 0, 1, 1], [], []>} : vector<8x128xf32>, vector<128x128xf32>, vector<8x128xf32> -> vector<8x128xf32>
    %c1 = arith.constant 1 : index
    %c0_9 = arith.constant 0 : index
    %10 = vector.load %arg2[%c1, %c0_9] : memref<3x128xf32, #tpu.memory_space<vmem>>, vector<1x128xf32>
    %11 = vector.broadcast %10 : vector<1x128xf32> to vector<8x128xf32>
    %12 = arith.addf %9, %11 : vector<8x128xf32>
    %cst_10 = arith.constant 0.000000e+00 : f32
    %13 = vector.broadcast %cst_10 : f32 to vector<8x128xf32>
    %14 = arith.maximumf %12, %13 : vector<8x128xf32>
    %c0_11 = arith.constant 0 : index
    %c0_12 = arith.constant 0 : index
    %15 = vector.load %arg5[%c0_11, %c0_12] : memref<128x128xf32, #tpu.memory_space<vmem>>, vector<128x128xf32>
    %cst_13 = arith.constant dense<0.000000e+00> : vector<8x128xf32>
    %16 = tpu.matmul %14, %15, %cst_13 {dimension_numbers = #tpu.dot_dimension_numbers<[1], [0], [0], [1], [0, 0, 1, 1], [], []>} : vector<8x128xf32>, vector<128x128xf32>, vector<8x128xf32> -> vector<8x128xf32>
    %c2 = arith.constant 2 : index
    %c0_14 = arith.constant 0 : index
    %17 = vector.load %arg2[%c2, %c0_14] : memref<3x128xf32, #tpu.memory_space<vmem>>, vector<1x128xf32>
    %18 = vector.broadcast %17 : vector<1x128xf32> to vector<8x128xf32>
    %19 = arith.addf %16, %18 : vector<8x128xf32>
    %c0_15 = arith.constant 0 : index
    %c0_16 = arith.constant 0 : index
    %20 = vector.load %arg6[%c0_15, %c0_16] : memref<8x128xf32, #tpu.memory_space<vmem>>, vector<8x128xf32>
    tpu.vector_store %arg6[%c0_15, %c0_16], %19 {strides = array<i32>} : memref<8x128xf32, #tpu.memory_space<vmem>>, vector<8x128xf32>,
    return
  }
  func.func @transform_0(%arg0: i32) -> (i32, i32) {
    %c0_i32 = arith.constant 0 : i32
    %c0_i32_0 = arith.constant 0 : i32
    return %arg0, %c0_i32 : i32, i32
  }
  func.func @transform_1(%arg0: i32) -> (i32, i32) {
    %c0_i32 = arith.constant 0 : i32
    %c0_i32_0 = arith.constant 0 : i32
    %c0_i32_1 = arith.constant 0 : i32
    return %c0_i32, %c0_i32_0 : i32, i32
  }
  func.func @transform_2(%arg0: i32) -> (i32, i32) {
    %c0_i32 = arith.constant 0 : i32
    %c0_i32_0 = arith.constant 0 : i32
    %c0_i32_1 = arith.constant 0 : i32
    return %c0_i32, %c0_i32_0 : i32, i32
  }
  func.func @transform_3(%arg0: i32) -> (i32, i32) {
    %c0_i32 = arith.constant 0 : i32
    %c0_i32_0 = arith.constant 0 : i32
    %c0_i32_1 = arith.constant 0 : i32
    return %c0_i32, %c0_i32_0 : i32, i32
  }
  func.func @transform_4(%arg0: i32) -> (i32, i32) {
    %c0_i32 = arith.constant 0 : i32
    %c0_i32_0 = arith.constant 0 : i32
    %c0_i32_1 = arith.constant 0 : i32
    return %c0_i32, %c0_i32_0 : i32, i32
  }
  func.func @transform_5(%arg0: i32) -> (i32, i32) {
    %c0_i32 = arith.constant 0 : i32
    %c0_i32_0 = arith.constant 0 : i32
    return %arg0, %c0_i32 : i32, i32
  }
}

</mosaic_0001>

<llo_original>
// kernel: tpu_custom_call.1
$region0: #{tpu_custom_call.1}
  #allocation0 [shape = 'u32[]', space=smem, size = 0x4, offset = 0x4, fixed_abs, tag = 'smem constant byte address 0x4 - core index']
  #allocation1 [shape = 'u32[144,128]{1,0:T(1,128)}', space=vmem, size = 0x12000, scoped, tag = 'internal scratch']
  %s0 = inlined_call_operand.hbm [shape: f32[8,128], index: 0, kind: input, shape index: {}]
  %s1 = inlined_call_operand.hbm [shape: f32[3,128], index: 1, kind: input, shape index: {}]
  %s2 = inlined_call_operand.hbm [shape: f32[128,128], index: 2, kind: input, shape index: {}]
  %s3 = inlined_call_operand.hbm [shape: f32[128,128], index: 3, kind: input, shape index: {}]
  %s4 = inlined_call_operand.hbm [shape: f32[128,128], index: 4, kind: input, shape index: {}]
  %s5 = inlined_call_operand.hbm [shape: f32[8,128], index: 5, kind: output, shape index: {}]
  %s6 = sld [smem:[#allocation0]]
  $region50: #{tpu_custom_call.1} parent=0
    _
  %s8 = ssub.s32 1, %s6
  %s9 = scalar_select 0, %s8, %s6
  $region1: #{tpu_custom_call.1} parent=0
    #allocation2 [shape = 'u8[4096]{0}', space=vmem, size = 0x1000, scoped, tag = 'input window, operand 0, single buffered']
    #allocation3 [shape = 's32[1]{0}', space=sflag, size = 0x4, scoped, tag = 'scoped memory for tpu_custom_call.1']
    #allocation4 [shape = 's32[1]{0}', space=sflag, size = 0x4, scoped, tag = 'scoped memory for tpu_custom_call.1']
    #allocation5 [shape = 'u8[2048]{0}', space=vmem, size = 0x800, scoped, tag = 'input window, operand 1, single buffered']
    #allocation6 [shape = 's32[1]{0}', space=sflag, size = 0x4, scoped, tag = 'scoped memory for tpu_custom_call.1']
    #allocation7 [shape = 'u8[65536]{0}', space=vmem, size = 0x10000, scoped, tag = 'input window, operand 2, single buffered']
    #allocation8 [shape = 'u8[65536]{0}', space=vmem, size = 0x10000, scoped, tag = 'input window, operand 3, single buffered']
    #allocation9 [shape = 's32[1]{0}', space=sflag, size = 0x4, scoped, tag = 'scoped memory for tpu_custom_call.1']
    #allocation10 [shape = 'u8[65536]{0}', space=vmem, size = 0x10000, scoped, tag = 'input window, operand 4, single buffered']
    #allocation11 [shape = 'u8[4096]{0}', space=vmem, size = 0x1000, scoped, tag = 'output window, operand 0, single buffered']
    %10 = vsyncpa [#allocation3], 0
    %11 = vsyncpa [#allocation6], 0
    %12 = vsyncpa [#allocation9], 0
    %13 = vsyncpa [#allocation4], 0
    // Predicated region
    $region2: #{tpu_custom_call.1} parent=1 // pred_check
      _
    $region3: #{tpu_custom_call.1} parent=1 // pred_check_branch
      %15 = sbr.rel (0) target = $region5
    $region4: #{tpu_custom_call.1} parent=1 // pred_region
      %s17 = ssub.s32 128, 128
      %18 = vsyncadd [#allocation3], %s17
      %s20 = sshll.u32 [#allocation2], 4
      %s21 = int_to_ptr.vmem [resolvable:$true] %s20
      %23 = dma.hbm_to_vmem [thread:$0]  %s0, 128, %s21, [#allocation3]
    $region5: #{tpu_custom_call.1} parent=1 // pred_fallthru
      _
    // Predicated region
    $region6: #{tpu_custom_call.1} parent=1 // pred_check
      _
    $region7: #{tpu_custom_call.1} parent=1 // pred_check_branch
      %25 = sbr.rel (0) target = $region9
    $region8: #{tpu_custom_call.1} parent=1 // pred_region
      %s27 = ssub.s32 64, 64
      %28 = vsyncadd [#allocation6], %s27
      %s30 = sshll.u32 [#allocation5], 4
      %s31 = int_to_ptr.vmem [resolvable:$true] %s30
      %33 = dma.hbm_to_vmem [thread:$0]  %s1, 64, %s31, [#allocation6]
    $region9: #{tpu_custom_call.1} parent=1 // pred_fallthru
      _
    // Predicated region
    $region10: #{tpu_custom_call.1} parent=1 // pred_check
      _
    $region11: #{tpu_custom_call.1} parent=1 // pred_check_branch
      %35 = sbr.rel (0) target = $region13
    $region12: #{tpu_custom_call.1} parent=1 // pred_region
      %s37 = ssub.s32 2048, 2048
      %38 = vsyncadd [#allocation6], %s37
      %s39 = sshll.u32 [#allocation7], 4
      %s40 = int_to_ptr.vmem [resolvable:$true] %s39
      %45 = dma.hbm_to_vmem [thread:$0]  %s2, 2048, %s40, [#allocation6], 128, 128, 8
    $region13: #{tpu_custom_call.1} parent=1 // pred_fallthru
      _
    // Predicated region
    $region14: #{tpu_custom_call.1} parent=1 // pred_check
      _
    $region15: #{tpu_custom_call.1} parent=1 // pred_check_branch
      %47 = sbr.rel (0) target = $region17
    $region16: #{tpu_custom_call.1} parent=1 // pred_region
      %s49 = ssub.s32 2048, 2048
      %50 = vsyncadd [#allocation9], %s49
      %s51 = sshll.u32 [#allocation8], 4
      %s52 = int_to_ptr.vmem [resolvable:$true] %s51
      %57 = dma.hbm_to_vmem [thread:$0]  %s3, 2048, %s52, [#allocation9], 128, 128, 8
    $region17: #{tpu_custom_call.1} parent=1 // pred_fallthru
      _
    // Predicated region
    $region18: #{tpu_custom_call.1} parent=1 // pred_check
      _
    $region19: #{tpu_custom_call.1} parent=1 // pred_check_branch
      %59 = sbr.rel (0) target = $region21
    $region20: #{tpu_custom_call.1} parent=1 // pred_region
      %s61 = ssub.s32 2048, 2048
      %62 = vsyncadd [#allocation9], %s61
      %s63 = sshll.u32 [#allocation10], 4
      %s64 = int_to_ptr.vmem [resolvable:$true] %s63
      %69 = dma.hbm_to_vmem [thread:$0]  %s4, 2048, %s64, [#allocation9], 128, 128, 8
    $region21: #{tpu_custom_call.1} parent=1 // pred_fallthru
      _
    // Predicated region
    $region22: #{tpu_custom_call.1} parent=1 // pred_check
      _
    $region23: #{tpu_custom_call.1} parent=1 // pred_check_branch
      %71 = sbr.rel (0) target = $region25
    $region24: #{tpu_custom_call.1} parent=1 // pred_region
      %72 = dma.done [#allocation3], 128
    $region25: #{tpu_custom_call.1} parent=1 // pred_fallthru
      _
    // Predicated region
    $region26: #{tpu_custom_call.1} parent=1 // pred_check
      _
    $region27: #{tpu_custom_call.1} parent=1 // pred_check_branch
      %74 = sbr.rel (0) target = $region29
    $region28: #{tpu_custom_call.1} parent=1 // pred_region
      %75 = dma.done [#allocation6], 64
    $region29: #{tpu_custom_call.1} parent=1 // pred_fallthru
      _
    // Predicated region
    $region30: #{tpu_custom_call.1} parent=1 // pred_check
      _
    $region31: #{tpu_custom_call.1} parent=1 // pred_check_branch
      %77 = sbr.rel (0) target = $region33
    $region32: #{tpu_custom_call.1} parent=1 // pred_region
      %78 = dma.done [#allocation6], 2048
    $region33: #{tpu_custom_call.1} parent=1 // pred_fallthru
      _
    // Predicated region
    $region34: #{tpu_custom_call.1} parent=1 // pred_check
      _
    $region35: #{tpu_custom_call.1} parent=1 // pred_check_branch
      %80 = sbr.rel (0) target = $region37
    $region36: #{tpu_custom_call.1} parent=1 // pred_region
      %81 = dma.done [#allocation9], 2048
    $region37: #{tpu_custom_call.1} parent=1 // pred_fallthru
      _
    // Predicated region
    $region38: #{tpu_custom_call.1} parent=1 // pred_check
      _
    $region39: #{tpu_custom_call.1} parent=1 // pred_check_branch
      %83 = sbr.rel (0) target = $region41
    $region40: #{tpu_custom_call.1} parent=1 // pred_region
      %84 = dma.done [#allocation9], 2048
    $region41: #{tpu_custom_call.1} parent=1 // pred_fallthru
      _
    %v85 = vld [vmem:[#allocation2] sm:$0xff]
    %v86 = vld [vmem:[#allocation7] sm:$0xff]
    %v87 = vld [vmem:[#allocation7 + $0x8] sm:$0xff]
    %v88 = vld [vmem:[#allocation7 + $0x10] sm:$0xff]
    %v89 = vld [vmem:[#allocation7 + $0x18] sm:$0xff]
    %v90 = vld [vmem:[#allocation7 + $0x20] sm:$0xff]
    %v91 = vld [vmem:[#allocation7 + $0x28] sm:$0xff]
    %v92 = vld [vmem:[#allocation7 + $0x30] sm:$0xff]
    %v93 = vld [vmem:[#allocation7 + $0x38] sm:$0xff]
    %v94 = vld [vmem:[#allocation7 + $0x40] sm:$0xff]
    %v95 = vld [vmem:[#allocation7 + $0x48] sm:$0xff]
    %v96 = vld [vmem:[#allocation7 + $0x50] sm:$0xff]
    %v97 = vld [vmem:[#allocation7 + $0x58] sm:$0xff]
    %v98 = vld [vmem:[#allocation7 + $0x60] sm:$0xff]
    %v99 = vld [vmem:[#allocation7 + $0x68] sm:$0xff]
    %v100 = vld [vmem:[#allocation7 + $0x70] sm:$0xff]
    %v101 = vld [vmem:[#allocation7 + $0x78] sm:$0xff]
    %v102 = vld [vmem:[#allocation5] sm:$0x1]
    %v103 = vlaneseq
    %v104 = vshrl.u32 %v103, 7
    %v105 = vsub.s32 0, %v104
    %v106 = vrot.slane %v102, %v105
    %107 = vmatprep.subr.mxu0 0.0
    %108 = vmatpush1.msra.mxu0 %v86
    %109 = vmatprep.subr.mxu0 0.0
    %110 = vmatpush1.msra.mxu0 %v87
    %111 = vmatprep.subr.mxu0 0.0
    %112 = vmatpush1.msra.mxu0 %v88
    %113 = vmatprep.subr.mxu0 0.0
    %114 = vmatpush1.msra.mxu0 %v89
    %115 = vmatprep.subr.mxu0 0.0
    %116 = vmatpush1.msra.mxu0 %v90
    %117 = vmatprep.subr.mxu0 0.0
    %118 = vmatpush1.msra.mxu0 %v91
    %119 = vmatprep.subr.mxu0 0.0
    %120 = vmatpush1.msra.mxu0 %v92
    %121 = vmatprep.subr.mxu0 0.0
    %122 = vmatpush1.msra.mxu0 %v93
    %123 = vmatprep.subr.mxu0 0.0
    %124 = vmatpush1.msra.mxu0 %v94
    %125 = vmatprep.subr.mxu0 0.0
    %126 = vmatpush1.msra.mxu0 %v95
    %127 = vmatprep.subr.mxu0 0.0
    %128 = vmatpush1.msra.mxu0 %v96
    %129 = vmatprep.subr.mxu0 0.0
    %130 = vmatpush1.msra.mxu0 %v97
    %131 = vmatprep.subr.mxu0 0.0
    %132 = vmatpush1.msra.mxu0 %v98
    %133 = vmatprep.subr.mxu0 0.0
    %134 = vmatpush1.msra.mxu0 %v99
    %135 = vmatprep.subr.mxu0 0.0
    %136 = vmatpush1.msra.mxu0 %v100
    %137 = vmatprep.subr.mxu0 0.0
    %138 = vmatpush1.msra.mxu0 %v101
    %139 = vmatprep.subr.mxu0 0.0
    %140 = vmatpush1.msra.mxu0 0.0
    %141 = vmatprep.subr.mxu0 0.0
    %142 = vmatpush1.msra.mxu0 0.0
    %143 = vmatprep.subr.mxu0 0.0
    %144 = vmatpush1.msra.mxu0 0.0
    %145 = vmatprep.subr.mxu0 0.0
    %146 = vmatpush1.msra.mxu0 0.0
    %147 = vmatprep.subr.mxu0 0.0
    %148 = vmatpush1.msra.mxu0 0.0
    %149 = vmatprep.subr.mxu0 0.0
    %150 = vmatpush1.msra.mxu0 0.0
    %151 = vmatprep.subr.mxu0 0.0
    %152 = vmatpush1.msra.mxu0 0.0
    %153 = vmatprep.subr.mxu0 0.0
    %154 = vmatpush1.msra.mxu0 0.0
    %155 = vmatprep.subr.mxu0 0.0
    %156 = vmatpush1.msra.mxu0 0.0
    %157 = vmatprep.subr.mxu0 0.0
    %158 = vmatpush1.msra.mxu0 0.0
    %159 = vmatprep.subr.mxu0 0.0
    %160 = vmatpush1.msra.mxu0 0.0
    %161 = vmatprep.subr.mxu0 0.0
    %162 = vmatpush1.msra.mxu0 0.0
    %163 = vmatprep.subr.mxu0 0.0
    %164 = vmatpush1.msra.mxu0 0.0
    %165 = vmatprep.subr.mxu0 0.0
    %166 = vmatpush1.msra.mxu0 0.0
    %167 = vmatprep.subr.mxu0 0.0
    %168 = vmatpush1.msra.mxu0 0.0
    %169 = vmatprep.subr.mxu0 0.0
    %170 = vmatpush1.msra.mxu0 0.0
    %171 = vmatprep.mubr.f32.mxu0 0.0
    %172 = vmatmul.mubr.f32.gmra.mrb[0].mxu0 %v85
    %v173 = vpop.f32.mrb[0].mxu0
    %v174 = vadd.f32 %v106, %v173
    %v175 = vpop.f32.mrb[0].mxu0
    %176 = vdwg.mxu0
    %v177 = vmax.f32 %v174, 0.0
    %v178 = vld [vmem:[#allocation8] sm:$0xff]
    %v179 = vld [vmem:[#allocation8 + $0x8] sm:$0xff]
    %v180 = vld [vmem:[#allocation8 + $0x10] sm:$0xff]
    %v181 = vld [vmem:[#allocation8 + $0x18] sm:$0xff]
    %v182 = vld [vmem:[#allocation8 + $0x20] sm:$0xff]
    %v183 = vld [vmem:[#allocation8 + $0x28] sm:$0xff]
    %v184 = vld [vmem:[#allocation8 + $0x30] sm:$0xff]
    %v185 = vld [vmem:[#allocation8 + $0x38] sm:$0xff]
    %v186 = vld [vmem:[#allocation8 + $0x40] sm:$0xff]
    %v187 = vld [vmem:[#allocation8 + $0x48] sm:$0xff]
    %v188 = vld [vmem:[#allocation8 + $0x50] sm:$0xff]
    %v189 = vld [vmem:[#allocation8 + $0x58] sm:$0xff]
    %v190 = vld [vmem:[#allocation8 + $0x60] sm:$0xff]
    %v191 = vld [vmem:[#allocation8 + $0x68] sm:$0xff]
    %v192 = vld [vmem:[#allocation8 + $0x70] sm:$0xff]
    %v193 = vld [vmem:[#allocation8 + $0x78] sm:$0xff]
    %v194 = vld [vmem:[#allocation5 + $0x1] sm:$0x1]
    %v195 = vlaneseq
    %v196 = vshrl.u32 %v195, 7
    %v197 = vsub.s32 0, %v196
    %v198 = vrot.slane %v194, %v197
    %199 = vmatprep.subr.mxu0 0.0
    %200 = vmatpush1.msra.mxu0 %v178
    %201 = vmatprep.subr.mxu0 0.0
    %202 = vmatpush1.msra.mxu0 %v179
    %203 = vmatprep.subr.mxu0 0.0
    %204 = vmatpush1.msra.mxu0 %v180
    %205 = vmatprep.subr.mxu0 0.0
    %206 = vmatpush1.msra.mxu0 %v181
    %207 = vmatprep.subr.mxu0 0.0
    %208 = vmatpush1.msra.mxu0 %v182
    %209 = vmatprep.subr.mxu0 0.0
    %210 = vmatpush1.msra.mxu0 %v183
    %211 = vmatprep.subr.mxu0 0.0
    %212 = vmatpush1.msra.mxu0 %v184
    %213 = vmatprep.subr.mxu0 0.0
    %214 = vmatpush1.msra.mxu0 %v185
    %215 = vmatprep.subr.mxu0 0.0
    %216 = vmatpush1.msra.mxu0 %v186
    %217 = vmatprep.subr.mxu0 0.0
    %218 = vmatpush1.msra.mxu0 %v187
    %219 = vmatprep.subr.mxu0 0.0
    %220 = vmatpush1.msra.mxu0 %v188
    %221 = vmatprep.subr.mxu0 0.0
    %222 = vmatpush1.msra.mxu0 %v189
    %223 = vmatprep.subr.mxu0 0.0
    %224 = vmatpush1.msra.mxu0 %v190
    %225 = vmatprep.subr.mxu0 0.0
    %226 = vmatpush1.msra.mxu0 %v191
    %227 = vmatprep.subr.mxu0 0.0
    %228 = vmatpush1.msra.mxu0 %v192
    %229 = vmatprep.subr.mxu0 0.0
    %230 = vmatpush1.msra.mxu0 %v193
    %231 = vmatprep.subr.mxu0 0.0
    %232 = vmatpush1.msra.mxu0 0.0
    %233 = vmatprep.subr.mxu0 0.0
    %234 = vmatpush1.msra.mxu0 0.0
    %235 = vmatprep.subr.mxu0 0.0
    %236 = vmatpush1.msra.mxu0 0.0
    %237 = vmatprep.subr.mxu0 0.0
    %238 = vmatpush1.msra.mxu0 0.0
    %239 = vmatprep.subr.mxu0 0.0
    %240 = vmatpush1.msra.mxu0 0.0
    %241 = vmatprep.subr.mxu0 0.0
    %242 = vmatpush1.msra.mxu0 0.0
    %243 = vmatprep.subr.mxu0 0.0
    %244 = vmatpush1.msra.mxu0 0.0
    %245 = vmatprep.subr.mxu0 0.0
    %246 = vmatpush1.msra.mxu0 0.0
    %247 = vmatprep.subr.mxu0 0.0
    %248 = vmatpush1.msra.mxu0 0.0
    %249 = vmatprep.subr.mxu0 0.0
    %250 = vmatpush1.msra.mxu0 0.0
    %251 = vmatprep.subr.mxu0 0.0
    %252 = vmatpush1.msra.mxu0 0.0
    %253 = vmatprep.subr.mxu0 0.0
    %254 = vmatpush1.msra.mxu0 0.0
    %255 = vmatprep.subr.mxu0 0.0
    %256 = vmatpush1.msra.mxu0 0.0
    %257 = vmatprep.subr.mxu0 0.0
    %258 = vmatpush1.msra.mxu0 0.0
    %259 = vmatprep.subr.mxu0 0.0
    %260 = vmatpush1.msra.mxu0 0.0
    %261 = vmatprep.subr.mxu0 0.0
    %262 = vmatpush1.msra.mxu0 0.0
    %263 = vmatprep.mubr.f32.mxu0 0.0
    %264 = vmatmul.mubr.f32.gmra.mrb[0].mxu0 %v177
    %v265 = vpop.f32.mrb[0].mxu0
    %v266 = vadd.f32 %v198, %v265
    %v267 = vpop.f32.mrb[0].mxu0
    %268 = vdwg.mxu0
    %v269 = vmax.f32 %v266, 0.0
    %v270 = vld [vmem:[#allocation10] sm:$0xff]
    %v271 = vld [vmem:[#allocation10 + $0x8] sm:$0xff]
    %v272 = vld [vmem:[#allocation10 + $0x10] sm:$0xff]
    %v273 = vld [vmem:[#allocation10 + $0x18] sm:$0xff]
    %v274 = vld [vmem:[#allocation10 + $0x20] sm:$0xff]
    %v275 = vld [vmem:[#allocation10 + $0x28] sm:$0xff]
    %v276 = vld [vmem:[#allocation10 + $0x30] sm:$0xff]
    %v277 = vld [vmem:[#allocation10 + $0x38] sm:$0xff]
    %v278 = vld [vmem:[#allocation10 + $0x40] sm:$0xff]
    %v279 = vld [vmem:[#allocation10 + $0x48] sm:$0xff]
    %v280 = vld [vmem:[#allocation10 + $0x50] sm:$0xff]
    %v281 = vld [vmem:[#allocation10 + $0x58] sm:$0xff]
    %v282 = vld [vmem:[#allocation10 + $0x60] sm:$0xff]
    %v283 = vld [vmem:[#allocation10 + $0x68] sm:$0xff]
    %v284 = vld [vmem:[#allocation10 + $0x70] sm:$0xff]
    %v285 = vld [vmem:[#allocation10 + $0x78] sm:$0xff]
    %v286 = vld [vmem:[#allocation5 + $0x2] sm:$0x1]
    %v287 = vlaneseq
    %v288 = vshrl.u32 %v287, 7
    %v289 = vsub.s32 0, %v288
    %v290 = vrot.slane %v286, %v289
    %291 = vmatprep.subr.mxu0 0.0
    %292 = vmatpush1.msra.mxu0 %v270
    %293 = vmatprep.subr.mxu0 0.0
    %294 = vmatpush1.msra.mxu0 %v271
    %295 = vmatprep.subr.mxu0 0.0
    %296 = vmatpush1.msra.mxu0 %v272
    %297 = vmatprep.subr.mxu0 0.0
    %298 = vmatpush1.msra.mxu0 %v273
    %299 = vmatprep.subr.mxu0 0.0
    %300 = vmatpush1.msra.mxu0 %v274
    %301 = vmatprep.subr.mxu0 0.0
    %302 = vmatpush1.msra.mxu0 %v275
    %303 = vmatprep.subr.mxu0 0.0
    %304 = vmatpush1.msra.mxu0 %v276
    %305 = vmatprep.subr.mxu0 0.0
    %306 = vmatpush1.msra.mxu0 %v277
    %307 = vmatprep.subr.mxu0 0.0
    %308 = vmatpush1.msra.mxu0 %v278
    %309 = vmatprep.subr.mxu0 0.0
    %310 = vmatpush1.msra.mxu0 %v279
    %311 = vmatprep.subr.mxu0 0.0
    %312 = vmatpush1.msra.mxu0 %v280
    %313 = vmatprep.subr.mxu0 0.0
    %314 = vmatpush1.msra.mxu0 %v281
    %315 = vmatprep.subr.mxu0 0.0
    %316 = vmatpush1.msra.mxu0 %v282
    %317 = vmatprep.subr.mxu0 0.0
    %318 = vmatpush1.msra.mxu0 %v283
    %319 = vmatprep.subr.mxu0 0.0
    %320 = vmatpush1.msra.mxu0 %v284
    %321 = vmatprep.subr.mxu0 0.0
    %322 = vmatpush1.msra.mxu0 %v285
    %323 = vmatprep.subr.mxu0 0.0
    %324 = vmatpush1.msra.mxu0 0.0
    %325 = vmatprep.subr.mxu0 0.0
    %326 = vmatpush1.msra.mxu0 0.0
    %327 = vmatprep.subr.mxu0 0.0
    %328 = vmatpush1.msra.mxu0 0.0
    %329 = vmatprep.subr.mxu0 0.0
    %330 = vmatpush1.msra.mxu0 0.0
    %331 = vmatprep.subr.mxu0 0.0
    %332 = vmatpush1.msra.mxu0 0.0
    %333 = vmatprep.subr.mxu0 0.0
    %334 = vmatpush1.msra.mxu0 0.0
    %335 = vmatprep.subr.mxu0 0.0
    %336 = vmatpush1.msra.mxu0 0.0
    %337 = vmatprep.subr.mxu0 0.0
    %338 = vmatpush1.msra.mxu0 0.0
    %339 = vmatprep.subr.mxu0 0.0
    %340 = vmatpush1.msra.mxu0 0.0
    %341 = vmatprep.subr.mxu0 0.0
    %342 = vmatpush1.msra.mxu0 0.0
    %343 = vmatprep.subr.mxu0 0.0
    %344 = vmatpush1.msra.mxu0 0.0
    %345 = vmatprep.subr.mxu0 0.0
    %346 = vmatpush1.msra.mxu0 0.0
    %347 = vmatprep.subr.mxu0 0.0
    %348 = vmatpush1.msra.mxu0 0.0
    %349 = vmatprep.subr.mxu0 0.0
    %350 = vmatpush1.msra.mxu0 0.0
    %351 = vmatprep.subr.mxu0 0.0
    %352 = vmatpush1.msra.mxu0 0.0
    %353 = vmatprep.subr.mxu0 0.0
    %354 = vmatpush1.msra.mxu0 0.0
    %355 = vmatprep.mubr.f32.mxu0 0.0
    %356 = vmatmul.mubr.f32.gmra.mrb[0].mxu0 %v269
    %v357 = vpop.f32.mrb[0].mxu0
    %v358 = vadd.f32 %v290, %v357
    %v359 = vpop.f32.mrb[0].mxu0
    %360 = vdwg.mxu0
    %361 = vst [vmem:[#allocation11] sm:$0xff] %v358
    // Predicated region
    $region42: #{tpu_custom_call.1} parent=1 // pred_check
      _
    $region43: #{tpu_custom_call.1} parent=1 // pred_check_branch
      %363 = sbr.rel (0) target = $region45
    $region44: #{tpu_custom_call.1} parent=1 // pred_region
      %s365 = ssub.s32 128, 128
      %366 = vsyncadd [#allocation4], %s365
      %s368 = sshll.u32 [#allocation11], 4
      %s369 = int_to_ptr.vmem [resolvable:$true] %s368
      %371 = dma.vmem_to_hbm [thread:$0]  %s369, 128, %s5, [#allocation4]
    $region45: #{tpu_custom_call.1} parent=1 // pred_fallthru
      _
    // Predicated region
    $region46: #{tpu_custom_call.1} parent=1 // pred_check
      _
    $region47: #{tpu_custom_call.1} parent=1 // pred_check_branch
      %373 = sbr.rel (0) target = $region49
    $region48: #{tpu_custom_call.1} parent=1 // pred_region
      %374 = dma.done [#allocation4], 128
    $region49: #{tpu_custom_call.1} parent=1 // pred_fallthru
      _
    %375 = vsyncpa [#allocation3], 1
    %376 = vsyncpa [#allocation6], 1
    %377 = vsyncpa [#allocation9], 1
    %378 = vsyncpa [#allocation4], 1

// kernel: tpu_custom_call.1
$region0: #{tpu_custom_call.1}
  #allocation0 [shape = 'u32[]', space=smem, size = 0x4, offset = 0x4, fixed_abs, tag = 'smem constant byte address 0x4 - core index']
  #allocation1 [shape = 'u32[144,128]{1,0:T(1,128)}', space=vmem, size = 0x12000, scoped, tag = 'internal scratch']
  %s0 = inlined_call_operand.hbm [shape: f32[8,128], index: 0, kind: input, shape index: {}]
  %s1 = inlined_call_operand.hbm [shape: f32[3,128], index: 1, kind: input, shape index: {}]
  %s2 = inlined_call_operand.hbm [shape: f32[128,128], index: 2, kind: input, shape index: {}]
  %s3 = inlined_call_operand.hbm [shape: f32[128,128], index: 3, kind: input, shape index: {}]
  %s4 = inlined_call_operand.hbm [shape: f32[128,128], index: 4, kind: input, shape index: {}]
  %s5 = inlined_call_operand.hbm [shape: f32[8,128], index: 5, kind: output, shape index: {}]
  %s6 = sld [smem:[#allocation0]]
  $region50: #{tpu_custom_call.1} parent=0
    _
  %s8 = ssub.s32 1, %s6
  %s9 = scalar_select 0, %s8, %s6
  $region1: #{tpu_custom_call.1} parent=0
    #allocation2 [shape = 'u8[4096]{0}', space=vmem, size = 0x1000, scoped, tag = 'input window, operand 0, single buffered']
    #allocation3 [shape = 's32[1]{0}', space=sflag, size = 0x4, scoped, tag = 'scoped memory for tpu_custom_call.1']
    #allocation4 [shape = 's32[1]{0}', space=sflag, size = 0x4, scoped, tag = 'scoped memory for tpu_custom_call.1']
    #allocation5 [shape = 'u8[2048]{0}', space=vmem, size = 0x800, scoped, tag = 'input window, operand 1, single buffered']
    #allocation6 [shape = 's32[1]{0}', space=sflag, size = 0x4, scoped, tag = 'scoped memory for tpu_custom_call.1']
    #allocation7 [shape = 'u8[65536]{0}', space=vmem, size = 0x10000, scoped, tag = 'input window, operand 2, single buffered']
    #allocation8 [shape = 'u8[65536]{0}', space=vmem, size = 0x10000, scoped, tag = 'input window, operand 3, single buffered']
    #allocation9 [shape = 's32[1]{0}', space=sflag, size = 0x4, scoped, tag = 'scoped memory for tpu_custom_call.1']
    #allocation10 [shape = 'u8[65536]{0}', space=vmem, size = 0x10000, scoped, tag = 'input window, operand 4, single buffered']
    #allocation11 [shape = 'u8[4096]{0}', space=vmem, size = 0x1000, scoped, tag = 'output window, operand 0, single buffered']
    %10 = vsyncpa [#allocation3], 0
    %11 = vsyncpa [#allocation6], 0
    %12 = vsyncpa [#allocation9], 0
    %13 = vsyncpa [#allocation4], 0
    // Predicated region
    $region2: #{tpu_custom_call.1} parent=1 // pred_check
      _
    $region3: #{tpu_custom_call.1} parent=1 // pred_check_branch
      %15 = sbr.rel (0) target = $region5
    $region4: #{tpu_custom_call.1} parent=1 // pred_region
      %s17 = ssub.s32 128, 128
      %18 = vsyncadd [#allocation3], %s17
      %s20 = sshll.u32 [#allocation2], 4
      %s21 = int_to_ptr.vmem [resolvable:$true] %s20
      %23 = dma.hbm_to_vmem [thread:$0]  %s0, 128, %s21, [#allocation3]
    $region5: #{tpu_custom_call.1} parent=1 // pred_fallthru
      _
    // Predicated region
    $region6: #{tpu_custom_call.1} parent=1 // pred_check
      _
    $region7: #{tpu_custom_call.1} parent=1 // pred_check_branch
      %25 = sbr.rel (0) target = $region9
    $region8: #{tpu_custom_call.1} parent=1 // pred_region
      %s27 = ssub.s32 64, 64
      %28 = vsyncadd [#allocation6], %s27
      %s30 = sshll.u32 [#allocation5], 4
      %s31 = int_to_ptr.vmem [resolvable:$true] %s30
      %33 = dma.hbm_to_vmem [thread:$0]  %s1, 64, %s31, [#allocation6]
    $region9: #{tpu_custom_call.1} parent=1 // pred_fallthru
      _
    // Predicated region
    $region10: #{tpu_custom_call.1} parent=1 // pred_check
      _
    $region11: #{tpu_custom_call.1} parent=1 // pred_check_branch
      %35 = sbr.rel (0) target = $region13
    $region12: #{tpu_custom_call.1} parent=1 // pred_region
      %s37 = ssub.s32 2048, 2048
      %38 = vsyncadd [#allocation6], %s37
      %s39 = sshll.u32 [#allocation7], 4
      %s40 = int_to_ptr.vmem [resolvable:$true] %s39
      %45 = dma.hbm_to_vmem [thread:$0]  %s2, 2048, %s40, [#allocation6], 128, 128, 8
    $region13: #{tpu_custom_call.1} parent=1 // pred_fallthru
      _
    // Predicated region
    $region14: #{tpu_custom_call.1} parent=1 // pred_check
      _
    $region15: #{tpu_custom_call.1} parent=1 // pred_check_branch
      %47 = sbr.rel (0) target = $region17
    $region16: #{tpu_custom_call.1} parent=1 // pred_region
      %s49 = ssub.s32 2048, 2048
      %50 = vsyncadd [#allocation9], %s49
      %s51 = sshll.u32 [#allocation8], 4
      %s52 = int_to_ptr.vmem [resolvable:$true] %s51
      %57 = dma.hbm_to_vmem [thread:$0]  %s3, 2048, %s52, [#allocation9], 128, 128, 8
    $region17: #{tpu_custom_call.1} parent=1 // pred_fallthru
      _
    // Predicated region
    $region18: #{tpu_custom_call.1} parent=1 // pred_check
      _
    $region19: #{tpu_custom_call.1} parent=1 // pred_check_branch
      %59 = sbr.rel (0) target = $region21
    $region20: #{tpu_custom_call.1} parent=1 // pred_region
      %s61 = ssub.s32 2048, 2048
      %62 = vsyncadd [#allocation9], %s61
      %s63 = sshll.u32 [#allocation10], 4
      %s64 = int_to_ptr.vmem [resolvable:$true] %s63
      %69 = dma.hbm_to_vmem [thread:$0]  %s4, 2048, %s64, [#allocation9], 128, 128, 8
    $region21: #{tpu_custom_call.1} parent=1 // pred_fallthru
      _
    // Predicated region
    $region22: #{tpu_custom_call.1} parent=1 // pred_check
      _
    $region23: #{tpu_custom_call.1} parent=1 // pred_check_branch
      %71 = sbr.rel (0) target = $region25
    $region24: #{tpu_custom_call.1} parent=1 // pred_region
      %72 = dma.done [#allocation3], 128
    $region25: #{tpu_custom_call.1} parent=1 // pred_fallthru
      _
    // Predicated region
    $region26: #{tpu_custom_call.1} parent=1 // pred_check
      _
    $region27: #{tpu_custom_call.1} parent=1 // pred_check_branch
      %74 = sbr.rel (0) target = $region29
    $region28: #{tpu_custom_call.1} parent=1 // pred_region
      %75 = dma.done [#allocation6], 64
    $region29: #{tpu_custom_call.1} parent=1 // pred_fallthru
      _
    // Predicated region
    $region30: #{tpu_custom_call.1} parent=1 // pred_check
      _
    $region31: #{tpu_custom_call.1} parent=1 // pred_check_branch
      %77 = sbr.rel (0) target = $region33
    $region32: #{tpu_custom_call.1} parent=1 // pred_region
      %78 = dma.done [#allocation6], 2048
    $region33: #{tpu_custom_call.1} parent=1 // pred_fallthru
      _
    // Predicated region
    $region34: #{tpu_custom_call.1} parent=1 // pred_check
      _
    $region35: #{tpu_custom_call.1} parent=1 // pred_check_branch
      %80 = sbr.rel (0) target = $region37
    $region36: #{tpu_custom_call.1} parent=1 // pred_region
      %81 = dma.done [#allocation9], 2048
    $region37: #{tpu_custom_call.1} parent=1 // pred_fallthru
      _
    // Predicated region
    $region38: #{tpu_custom_call.1} parent=1 // pred_check
      _
    $region39: #{tpu_custom_call.1} parent=1 // pred_check_branch
      %83 = sbr.rel (0) target = $region41
    $region40: #{tpu_custom_call.1} parent=1 // pred_region
      %84 = dma.done [#allocation9], 2048
    $region41: #{tpu_custom_call.1} parent=1 // pred_fallthru
      _
    %v85 = vld [vmem:[#allocation2] sm:$0xff]
    %v86 = vld [vmem:[#allocation7] sm:$0xff]
    %v87 = vld [vmem:[#allocation7 + $0x8] sm:$0xff]
    %v88 = vld [vmem:[#allocation7 + $0x10] sm:$0xff]
    %v89 = vld [vmem:[#allocation7 + $0x18] sm:$0xff]
    %v90 = vld [vmem:[#allocation7 + $0x20] sm:$0xff]
    %v91 = vld [vmem:[#allocation7 + $0x28] sm:$0xff]
    %v92 = vld [vmem:[#allocation7 + $0x30] sm:$0xff]
    %v93 = vld [vmem:[#allocation7 + $0x38] sm:$0xff]
    %v94 = vld [vmem:[#allocation7 + $0x40] sm:$0xff]
    %v95 = vld [vmem:[#allocation7 + $0x48] sm:$0xff]
    %v96 = vld [vmem:[#allocation7 + $0x50] sm:$0xff]
    %v97 = vld [vmem:[#allocation7 + $0x58] sm:$0xff]
    %v98 = vld [vmem:[#allocation7 + $0x60] sm:$0xff]
    %v99 = vld [vmem:[#allocation7 + $0x68] sm:$0xff]
    %v100 = vld [vmem:[#allocation7 + $0x70] sm:$0xff]
    %v101 = vld [vmem:[#allocation7 + $0x78] sm:$0xff]
    %v102 = vld [vmem:[#allocation5] sm:$0x1]
    %v103 = vlaneseq
    %v104 = vshrl.u32 %v103, 7
    %v105 = vsub.s32 0, %v104
    %v106 = vrot.slane %v102, %v105
    %107 = vmatprep.subr.mxu0 0.0
    %108 = vmatpush1.msra.mxu0 %v86
    %109 = vmatprep.subr.mxu0 0.0
    %110 = vmatpush1.msra.mxu0 %v87
    %111 = vmatprep.subr.mxu0 0.0
    %112 = vmatpush1.msra.mxu0 %v88
    %113 = vmatprep.subr.mxu0 0.0
    %114 = vmatpush1.msra.mxu0 %v89
    %115 = vmatprep.subr.mxu0 0.0
    %116 = vmatpush1.msra.mxu0 %v90
    %117 = vmatprep.subr.mxu0 0.0
    %118 = vmatpush1.msra.mxu0 %v91
    %119 = vmatprep.subr.mxu0 0.0
    %120 = vmatpush1.msra.mxu0 %v92
    %121 = vmatprep.subr.mxu0 0.0
    %122 = vmatpush1.msra.mxu0 %v93
    %123 = vmatprep.subr.mxu0 0.0
    %124 = vmatpush1.msra.mxu0 %v94
    %125 = vmatprep.subr.mxu0 0.0
    %126 = vmatpush1.msra.mxu0 %v95
    %127 = vmatprep.subr.mxu0 0.0
    %128 = vmatpush1.msra.mxu0 %v96
    %129 = vmatprep.subr.mxu0 0.0
    %130 = vmatpush1.msra.mxu0 %v97
    %131 = vmatprep.subr.mxu0 0.0
    %132 = vmatpush1.msra.mxu0 %v98
    %133 = vmatprep.subr.mxu0 0.0
    %134 = vmatpush1.msra.mxu0 %v99
    %135 = vmatprep.subr.mxu0 0.0
    %136 = vmatpush1.msra.mxu0 %v100
    %137 = vmatprep.subr.mxu0 0.0
    %138 = vmatpush1.msra.mxu0 %v101
    %139 = vmatprep.subr.mxu0 0.0
    %140 = vmatpush1.msra.mxu0 0.0
    %141 = vmatprep.subr.mxu0 0.0
    %142 = vmatpush1.msra.mxu0 0.0
    %143 = vmatprep.subr.mxu0 0.0
    %144 = vmatpush1.msra.mxu0 0.0
    %145 = vmatprep.subr.mxu0 0.0
    %146 = vmatpush1.msra.mxu0 0.0
    %147 = vmatprep.subr.mxu0 0.0
    %148 = vmatpush1.msra.mxu0 0.0
    %149 = vmatprep.subr.mxu0 0.0
    %150 = vmatpush1.msra.mxu0 0.0
    %151 = vmatprep.subr.mxu0 0.0
    %152 = vmatpush1.msra.mxu0 0.0
    %153 = vmatprep.subr.mxu0 0.0
    %154 = vmatpush1.msra.mxu0 0.0
    %155 = vmatprep.subr.mxu0 0.0
    %156 = vmatpush1.msra.mxu0 0.0
    %157 = vmatprep.subr.mxu0 0.0
    %158 = vmatpush1.msra.mxu0 0.0
    %159 = vmatprep.subr.mxu0 0.0
    %160 = vmatpush1.msra.mxu0 0.0
    %161 = vmatprep.subr.mxu0 0.0
    %162 = vmatpush1.msra.mxu0 0.0
    %163 = vmatprep.subr.mxu0 0.0
    %164 = vmatpush1.msra.mxu0 0.0
    %165 = vmatprep.subr.mxu0 0.0
    %166 = vmatpush1.msra.mxu0 0.0
    %167 = vmatprep.subr.mxu0 0.0
    %168 = vmatpush1.msra.mxu0 0.0
    %169 = vmatprep.subr.mxu0 0.0
    %170 = vmatpush1.msra.mxu0 0.0
    %171 = vmatprep.mubr.f32.mxu0 0.0
    %172 = vmatmul.mubr.f32.gmra.mrb[0].mxu0 %v85
    %v173 = vpop.f32.mrb[0].mxu0
    %v174 = vadd.f32 %v106, %v173
    %v175 = vpop.f32.mrb[0].mxu0
    %176 = vdwg.mxu0
    %v177 = vmax.f32 %v174, 0.0
    %v178 = vld [vmem:[#allocation8] sm:$0xff]
    %v179 = vld [vmem:[#allocation8 + $0x8] sm:$0xff]
    %v180 = vld [vmem:[#allocation8 + $0x10] sm:$0xff]
    %v181 = vld [vmem:[#allocation8 + $0x18] sm:$0xff]
    %v182 = vld [vmem:[#allocation8 + $0x20] sm:$0xff]
    %v183 = vld [vmem:[#allocation8 + $0x28] sm:$0xff]
    %v184 = vld [vmem:[#allocation8 + $0x30] sm:$0xff]
    %v185 = vld [vmem:[#allocation8 + $0x38] sm:$0xff]
    %v186 = vld [vmem:[#allocation8 + $0x40] sm:$0xff]
    %v187 = vld [vmem:[#allocation8 + $0x48] sm:$0xff]
    %v188 = vld [vmem:[#allocation8 + $0x50] sm:$0xff]
    %v189 = vld [vmem:[#allocation8 + $0x58] sm:$0xff]
    %v190 = vld [vmem:[#allocation8 + $0x60] sm:$0xff]
    %v191 = vld [vmem:[#allocation8 + $0x68] sm:$0xff]
    %v192 = vld [vmem:[#allocation8 + $0x70] sm:$0xff]
    %v193 = vld [vmem:[#allocation8 + $0x78] sm:$0xff]
    %v194 = vld [vmem:[#allocation5 + $0x1] sm:$0x1]
    %v195 = vlaneseq
    %v196 = vshrl.u32 %v195, 7
    %v197 = vsub.s32 0, %v196
    %v198 = vrot.slane %v194, %v197
    %199 = vmatprep.subr.mxu0 0.0
    %200 = vmatpush1.msra.mxu0 %v178
    %201 = vmatprep.subr.mxu0 0.0
    %202 = vmatpush1.msra.mxu0 %v179
    %203 = vmatprep.subr.mxu0 0.0
    %204 = vmatpush1.msra.mxu0 %v180
    %205 = vmatprep.subr.mxu0 0.0
    %206 = vmatpush1.msra.mxu0 %v181
    %207 = vmatprep.subr.mxu0 0.0
    %208 = vmatpush1.msra.mxu0 %v182
    %209 = vmatprep.subr.mxu0 0.0
    %210 = vmatpush1.msra.mxu0 %v183
    %211 = vmatprep.subr.mxu0 0.0
    %212 = vmatpush1.msra.mxu0 %v184
    %213 = vmatprep.subr.mxu0 0.0
    %214 = vmatpush1.msra.mxu0 %v185
    %215 = vmatprep.subr.mxu0 0.0
    %216 = vmatpush1.msra.mxu0 %v186
    %217 = vmatprep.subr.mxu0 0.0
    %218 = vmatpush1.msra.mxu0 %v187
    %219 = vmatprep.subr.mxu0 0.0
    %220 = vmatpush1.msra.mxu0 %v188
    %221 = vmatprep.subr.mxu0 0.0
    %222 = vmatpush1.msra.mxu0 %v189
    %223 = vmatprep.subr.mxu0 0.0
    %224 = vmatpush1.msra.mxu0 %v190
    %225 = vmatprep.subr.mxu0 0.0
    %226 = vmatpush1.msra.mxu0 %v191
    %227 = vmatprep.subr.mxu0 0.0
    %228 = vmatpush1.msra.mxu0 %v192
    %229 = vmatprep.subr.mxu0 0.0
    %230 = vmatpush1.msra.mxu0 %v193
    %231 = vmatprep.subr.mxu0 0.0
    %232 = vmatpush1.msra.mxu0 0.0
    %233 = vmatprep.subr.mxu0 0.0
    %234 = vmatpush1.msra.mxu0 0.0
    %235 = vmatprep.subr.mxu0 0.0
    %236 = vmatpush1.msra.mxu0 0.0
    %237 = vmatprep.subr.mxu0 0.0
    %238 = vmatpush1.msra.mxu0 0.0
    %239 = vmatprep.subr.mxu0 0.0
    %240 = vmatpush1.msra.mxu0 0.0
    %241 = vmatprep.subr.mxu0 0.0
    %242 = vmatpush1.msra.mxu0 0.0
    %243 = vmatprep.subr.mxu0 0.0
    %244 = vmatpush1.msra.mxu0 0.0
    %245 = vmatprep.subr.mxu0 0.0
    %246 = vmatpush1.msra.mxu0 0.0
    %247 = vmatprep.subr.mxu0 0.0
    %248 = vmatpush1.msra.mxu0 0.0
    %249 = vmatprep.subr.mxu0 0.0
    %250 = vmatpush1.msra.mxu0 0.0
    %251 = vmatprep.subr.mxu0 0.0
    %252 = vmatpush1.msra.mxu0 0.0
    %253 = vmatprep.subr.mxu0 0.0
    %254 = vmatpush1.msra.mxu0 0.0
    %255 = vmatprep.subr.mxu0 0.0
    %256 = vmatpush1.msra.mxu0 0.0
    %257 = vmatprep.subr.mxu0 0.0
    %258 = vmatpush1.msra.mxu0 0.0
    %259 = vmatprep.subr.mxu0 0.0
    %260 = vmatpush1.msra.mxu0 0.0
    %261 = vmatprep.subr.mxu0 0.0
    %262 = vmatpush1.msra.mxu0 0.0
    %263 = vmatprep.mubr.f32.mxu0 0.0
    %264 = vmatmul.mubr.f32.gmra.mrb[0].mxu0 %v177
    %v265 = vpop.f32.mrb[0].mxu0
    %v266 = vadd.f32 %v198, %v265
    %v267 = vpop.f32.mrb[0].mxu0
    %268 = vdwg.mxu0
    %v269 = vmax.f32 %v266, 0.0
    %v270 = vld [vmem:[#allocation10] sm:$0xff]
    %v271 = vld [vmem:[#allocation10 + $0x8] sm:$0xff]
    %v272 = vld [vmem:[#allocation10 + $0x10] sm:$0xff]
    %v273 = vld [vmem:[#allocation10 + $0x18] sm:$0xff]
    %v274 = vld [vmem:[#allocation10 + $0x20] sm:$0xff]
    %v275 = vld [vmem:[#allocation10 + $0x28] sm:$0xff]
    %v276 = vld [vmem:[#allocation10 + $0x30] sm:$0xff]
    %v277 = vld [vmem:[#allocation10 + $0x38] sm:$0xff]
    %v278 = vld [vmem:[#allocation10 + $0x40] sm:$0xff]
    %v279 = vld [vmem:[#allocation10 + $0x48] sm:$0xff]
    %v280 = vld [vmem:[#allocation10 + $0x50] sm:$0xff]
    %v281 = vld [vmem:[#allocation10 + $0x58] sm:$0xff]
    %v282 = vld [vmem:[#allocation10 + $0x60] sm:$0xff]
    %v283 = vld [vmem:[#allocation10 + $0x68] sm:$0xff]
    %v284 = vld [vmem:[#allocation10 + $0x70] sm:$0xff]
    %v285 = vld [vmem:[#allocation10 + $0x78] sm:$0xff]
    %v286 = vld [vmem:[#allocation5 + $0x2] sm:$0x1]
    %v287 = vlaneseq
    %v288 = vshrl.u32 %v287, 7
    %v289 = vsub.s32 0, %v288
    %v290 = vrot.slane %v286, %v289
    %291 = vmatprep.subr.mxu0 0.0
    %292 = vmatpush1.msra.mxu0 %v270
    %293 = vmatprep.subr.mxu0 0.0
    %294 = vmatpush1.msra.mxu0 %v271
    %295 = vmatprep.subr.mxu0 0.0
    %296 = vmatpush1.msra.mxu0 %v272
    %297 = vmatprep.subr.mxu0 0.0
    %298 = vmatpush1.msra.mxu0 %v273
    %299 = vmatprep.subr.mxu0 0.0
    %300 = vmatpush1.msra.mxu0 %v274
    %301 = vmatprep.subr.mxu0 0.0
    %302 = vmatpush1.msra.mxu0 %v275
    %303 = vmatprep.subr.mxu0 0.0
    %304 = vmatpush1.msra.mxu0 %v276
    %305 = vmatprep.subr.mxu0 0.0
    %306 = vmatpush1.msra.mxu0 %v277
    %307 = vmatprep.subr.mxu0 0.0
    %308 = vmatpush1.msra.mxu0 %v278
    %309 = vmatprep.subr.mxu0 0.0
    %310 = vmatpush1.msra.mxu0 %v279
    %311 = vmatprep.subr.mxu0 0.0
    %312 = vmatpush1.msra.mxu0 %v280
    %313 = vmatprep.subr.mxu0 0.0
    %314 = vmatpush1.msra.mxu0 %v281
    %315 = vmatprep.subr.mxu0 0.0
    %316 = vmatpush1.msra.mxu0 %v282
    %317 = vmatprep.subr.mxu0 0.0
    %318 = vmatpush1.msra.mxu0 %v283
    %319 = vmatprep.subr.mxu0 0.0
    %320 = vmatpush1.msra.mxu0 %v284
    %321 = vmatprep.subr.mxu0 0.0
    %322 = vmatpush1.msra.mxu0 %v285
    %323 = vmatprep.subr.mxu0 0.0
    %324 = vmatpush1.msra.mxu0 0.0
    %325 = vmatprep.subr.mxu0 0.0
    %326 = vmatpush1.msra.mxu0 0.0
    %327 = vmatprep.subr.mxu0 0.0
    %328 = vmatpush1.msra.mxu0 0.0
    %329 = vmatprep.subr.mxu0 0.0
    %330 = vmatpush1.msra.mxu0 0.0
    %331 = vmatprep.subr.mxu0 0.0
    %332 = vmatpush1.msra.mxu0 0.0
    %333 = vmatprep.subr.mxu0 0.0
    %334 = vmatpush1.msra.mxu0 0.0
    %335 = vmatprep.subr.mxu0 0.0
    %336 = vmatpush1.msra.mxu0 0.0
    %337 = vmatprep.subr.mxu0 0.0
    %338 = vmatpush1.msra.mxu0 0.0
    %339 = vmatprep.subr.mxu0 0.0
    %340 = vmatpush1.msra.mxu0 0.0
    %341 = vmatprep.subr.mxu0 0.0
    %342 = vmatpush1.msra.mxu0 0.0
    %343 = vmatprep.subr.mxu0 0.0
    %344 = vmatpush1.msra.mxu0 0.0
    %345 = vmatprep.subr.mxu0 0.0
    %346 = vmatpush1.msra.mxu0 0.0
    %347 = vmatprep.subr.mxu0 0.0
    %348 = vmatpush1.msra.mxu0 0.0
    %349 = vmatprep.subr.mxu0 0.0
    %350 = vmatpush1.msra.mxu0 0.0
    %351 = vmatprep.subr.mxu0 0.0
    %352 = vmatpush1.msra.mxu0 0.0
    %353 = vmatprep.subr.mxu0 0.0
    %354 = vmatpush1.msra.mxu0 0.0
    %355 = vmatprep.mubr.f32.mxu0 0.0
    %356 = vmatmul.mubr.f32.gmra.mrb[0].mxu0 %v269
    %v357 = vpop.f32.mrb[0].mxu0
    %v358 = vadd.f32 %v290, %v357
    %v359 = vpop.f32.mrb[0].mxu0
    %360 = vdwg.mxu0
    %361 = vst [vmem:[#allocation11] sm:$0xff] %v358
    // Predicated region
    $region42: #{tpu_custom_call.1} parent=1 // pred_check
      _
    $region43: #{tpu_custom_call.1} parent=1 // pred_check_branch
      %363 = sbr.rel (0) target = $region45
    $region44: #{tpu_custom_call.1} parent=1 // pred_region
      %s365 = ssub.s32 128, 128
      %366 = vsyncadd [#allocation4], %s365
      %s368 = sshll.u32 [#allocation11], 4
      %s369 = int_to_ptr.vmem [resolvable:$true] %s368
      %371 = dma.vmem_to_hbm [thread:$0]  %s369, 128, %s5, [#allocation4]
    $region45: #{tpu_custom_call.1} parent=1 // pred_fallthru
      _
    // Predicated region
    $region46: #{tpu_custom_call.1} parent=1 // pred_check
      _
    $region47: #{tpu_custom_call.1} parent=1 // pred_check_branch
      %373 = sbr.rel (0) target = $region49
    $region48: #{tpu_custom_call.1} parent=1 // pred_region
      %374 = dma.done [#allocation4], 128
    $region49: #{tpu_custom_call.1} parent=1 // pred_fallthru
      _
    %375 = vsyncpa [#allocation3], 1
    %376 = vsyncpa [#allocation6], 1
    %377 = vsyncpa [#allocation9], 1
    %378 = vsyncpa [#allocation4], 1

</llo_original>
